<compile_context>
chip_gen: v6e
topology: v6e:2x2x1
jax: 0.10.0
libtpu: 0.0.40
codegen_flags: <defaults>
</compile_context>

<pallas_src>
import functools

import jax
import jax.numpy as jnp
from jax import lax
from jax.experimental import pallas as pl
from jax.experimental.pallas import tpu as pltpu


# ----------------------------- in-kernel math -------------------------------

def _mish(x):
    # x * tanh(softplus(x)) == x * t / (t + 2) with t = e^x (e^x + 2).
    # One exp (EUP) + one approx reciprocal (EUP) instead of exp+log1p+tanh.
    w = jnp.exp(jnp.minimum(x, 20.0))          # clamp avoids inf*0 -> NaN
    t = w * (w + 2.0)
    return x * t * pl.reciprocal(t + 2.0, approx=True)


# ----------------------------- Pallas kernels -------------------------------

def _pw_kernel(x_ref, w_ref, s_ref, b_ref, o_ref, *, apply_act):
    """Fused 1x1 conv (bf16 matmul) + folded-BN scale/bias + optional Mish."""
    y = jnp.dot(x_ref[...], w_ref[...], preferred_element_type=jnp.float32)
    y = y * s_ref[...] + b_ref[...]
    if apply_act:
        y = _mish(y)
    o_ref[...] = y.astype(o_ref.dtype)


def _conv3x3_kernel(x_ref, w_ref, s_ref, b_ref, o_ref, pad_ref):
    """3x3 conv (pad=1, stride=1) + folded-BN + Mish on one row strip.

    grid = (N, R).  x_ref holds the full image (its block index is constant
    over the row axis, so it is DMA'd once per image); the strip window (with a
    1-row halo, clamped to the image) is staged in a zero-bordered VMEM scratch
    and only this strip's `th` output rows are computed / stored.
    """
    H, W, cin = x_ref.shape[1], x_ref.shape[2], x_ref.shape[3]
    th, cout = o_ref.shape[1], o_ref.shape[3]
    win = pad_ref.shape[1] - 2                     # window rows (th + 2, or H)

    r = pl.program_id(1)
    ws = jnp.clip(r * th - 1, 0, H - win)          # window start (image rows)
    off = r * th - ws                              # strip offset inside window

    # Refresh only the zero border; the interior is fully overwritten below.
    pad_ref[:, 0:1, :, :] = jnp.zeros((1, 1, W + 2, cin), pad_ref.dtype)
    pad_ref[:, win + 1:win + 2, :, :] = jnp.zeros((1, 1, W + 2, cin),
                                                  pad_ref.dtype)
    pad_ref[:, :, 0:1, :] = jnp.zeros((1, win + 2, 1, cin), pad_ref.dtype)
    pad_ref[:, :, W + 1:W + 2, :] = jnp.zeros((1, win + 2, 1, cin),
                                              pad_ref.dtype)
    pad_ref[:, 1:1 + win, 1:1 + W, :] = x_ref[:, pl.ds(ws, win), :, :]

    acc = None
    for dy in range(3):
        for dx in range(3):
            # TODO(synk): replace the dx sublane-offset slice with pltpu.roll
            # once layout support is verified for these shapes.
            patch = pad_ref[:, pl.ds(off + dy, th), dx:dx + W, :]
            d = jnp.dot(patch.reshape(th * W, cin), w_ref[dy, dx],
                        preferred_element_type=jnp.float32)
            acc = d if acc is None else acc + d
    y = _mish(acc * s_ref[...] + b_ref[...])
    o_ref[...] = y.reshape(1, th, W, cout).astype(o_ref.dtype)


def _spp_cv5_kernel(x_ref, w4_ref, s4_ref, b4_ref, w5_ref, s5_ref, b5_ref,
                    o_ref, pad_ref):
    """cv4 (1x1) + SPP (cascaded 5x5 pools == 5/9/13) + cv5 (1x1) + BN + Mish.

    Row-strip tiled (grid = (N, R)): the window is this strip extended by the
    6-row receptive-field halo of the cascaded pools, clamped to the image.
    cat([x1, mp5, mp9, mp13]) @ W5 is evaluated as 4 accumulated matmuls with
    each pooled branch produced in-register and interleaved with the cascade,
    so the 4x-wide concat never exists and at most one pooled map is live.
    pad_ref keeps a -inf border; the cascade identity (5o5 = 9, 5o5o5 = 13) is
    exact for stride-1 -inf padding, also when re-applied per stage.
    """
    H, W, c = x_ref.shape[1], x_ref.shape[2], x_ref.shape[3]
    th = o_ref.shape[1]
    win = pad_ref.shape[1] - 4                     # window rows

    r = pl.program_id(1)
    ws = jnp.clip(r * th - 6, 0, H - win)
    off = r * th - ws

    # Refresh only the -inf border (interior is overwritten every stage).
    pad_ref[:, 0:2, :, :] = jnp.full((1, 2, W + 4, c), -jnp.inf, pad_ref.dtype)
    pad_ref[:, win + 2:win + 4, :, :] = jnp.full((1, 2, W + 4, c), -jnp.inf,
                                                 pad_ref.dtype)
    pad_ref[:, :, 0:2, :] = jnp.full((1, win + 4, 2, c), -jnp.inf,
                                     pad_ref.dtype)
    pad_ref[:, :, W + 2:W + 4, :] = jnp.full((1, win + 4, 2, c), -jnp.inf,
                                             pad_ref.dtype)

    # x1 = cv4(window) fused: the (N,H,W,c_) activation never hits HBM.
    xw = x_ref[:, pl.ds(ws, win), :, :].reshape(win * W, c)
    x1 = _mish(jnp.dot(xw, w4_ref[...], preferred_element_type=jnp.float32)
               * s4_ref[...] + b4_ref[...])
    pad_ref[:, 2:2 + win, 2:2 + W, :] = (
        x1.astype(pad_ref.dtype).reshape(1, win, W, c))

    def strip_dot(k):
        blk = pad_ref[:, pl.ds(2 + off, th), 2:2 + W, :].reshape(th * W, c)
        return jnp.dot(blk, w5_ref[k], preferred_element_type=jnp.float32)

    def pool5():
        # 5x5, stride 1, -inf "same" padding; separable row-max then col-max.
        rm = pad_ref[:, 0:win, :, :]
        for dy in range(1, 5):
            rm = jnp.maximum(rm, pad_ref[:, dy:dy + win, :, :])
        # TODO(synk): use pltpu.roll for these sublane-offset column shifts.
        out = rm[:, :, 0:W, :]
        for dx in range(1, 5):
            out = jnp.maximum(out, rm[:, :, dx:dx + W, :])
        return out

    acc = strip_dot(0)                  # x1 chunk
    for k in range(1, 4):               # mp5, mp9, mp13 chunks, interleaved
        p = pool5()
        pad_ref[:, 2:2 + win, 2:2 + W, :] = p
        acc = acc + strip_dot(k)

    y = _mish(acc * s5_ref[...] + b5_ref[...])
    o_ref[...] = y.reshape(1, th, W, c).astype(o_ref.dtype)


def _cat_bn_mish_pw_kernel(y1_ref, y2_ref, s1_ref, b1_ref, s2_ref, b2_ref,
                           w7a_ref, w7b_ref, s7_ref, b7_ref, o_ref):
    """cv7(mish(bn(cat(y1, y2)))) with the channel concat split into 2 matmuls."""
    a = _mish(y1_ref[...].astype(jnp.float32) * s1_ref[...] + b1_ref[...])
    c = _mish(y2_ref[...].astype(jnp.float32) * s2_ref[...] + b2_ref[...])
    acc = jnp.dot(a.astype(w7a_ref.dtype), w7a_ref[...],
                  preferred_element_type=jnp.float32)
    acc = acc + jnp.dot(c.astype(w7b_ref.dtype), w7b_ref[...],
                        preferred_element_type=jnp.float32)
    o_ref[...] = _mish(acc * s7_ref[...] + b7_ref[...]).astype(o_ref.dtype)


# ----------------------------- pallas_call wrappers --------------------------

def _largest_divisor_leq(n, target):
    for d in range(min(int(target), int(n)), 0, -1):
        if n % d == 0:
            return d
    return n


def _choose_row_tile(m, target):
    """Row tile for the 2D matmul kernels: a divisor of m (x8), no jnp.pad."""
    if m <= target:
        return m
    t = (min(target, m) // 8) * 8
    while t >= 8:
        if m % t == 0:
            return t
        t -= 8
    return m                              # fall back to a single block


def _compiler_params(n_grid_dims):
    # v7x has only 64 MiB VMEM -> stay conservative; v5e/v6e have 128 MiB.
    try:
        kind = jax.devices()[0].device_kind.lower()
    except Exception:
        kind = ""
    vmem = (44 if "v7" in kind else 96) * 1024 * 1024
    return pltpu.CompilerParams(
        dimension_semantics=("parallel",) * n_grid_dims,
        vmem_limit_bytes=vmem)


def pointwise_conv(x2d, w, scale, bias, *, apply_act, out_dtype=jnp.bfloat16,
                   row_tile=1024):
    m, cin = x2d.shape
    cout = w.shape[1]
    tm = _choose_row_tile(m, row_tile)
    return pl.pallas_call(
        functools.partial(_pw_kernel, apply_act=apply_act),
        out_shape=jax.ShapeDtypeStruct((m, cout), out_dtype),
        grid=(m // tm,),
        in_specs=[
            pl.BlockSpec((tm, cin), lambda i: (i, 0)),
            pl.BlockSpec((cin, cout), lambda i: (0, 0)),
            pl.BlockSpec((1, cout), lambda i: (0, 0)),
            pl.BlockSpec((1, cout), lambda i: (0, 0)),
        ],
        out_specs=pl.BlockSpec((tm, cout), lambda i: (i, 0)),
        compiler_params=_compiler_params(1),
    )(x2d, w, scale, bias)


def conv3x3_bn_mish(x_nhwc, w, scale, bias, *, row_tile=16):
    n, h, wd, cin = x_nhwc.shape
    cout = w.shape[-1]
    th = _largest_divisor_leq(h, row_tile)
    win = min(h, th + 2)
    return pl.pallas_call(
        _conv3x3_kernel,
        out_shape=jax.ShapeDtypeStruct((n, h, wd, cout), jnp.bfloat16),
        grid=(n, h // th),
        in_specs=[
            pl.BlockSpec((1, h, wd, cin), lambda b, r: (b, 0, 0, 0)),
            pl.BlockSpec((3, 3, cin, cout), lambda b, r: (0, 0, 0, 0)),
            pl.BlockSpec((1, cout), lambda b, r: (0, 0)),
            pl.BlockSpec((1, cout), lambda b, r: (0, 0)),
        ],
        out_specs=pl.BlockSpec((1, th, wd, cout), lambda b, r: (b, r, 0, 0)),
        scratch_shapes=[pltpu.VMEM((1, win + 2, wd + 2, cin), jnp.bfloat16)],
        compiler_params=_compiler_params(2),
    )(x_nhwc, w, scale, bias)


def spp_cv4_cv5_bn_mish(x_nhwc, w4, s4, b4, w5, s5, b5, *, row_tile=32):
    n, h, wd, c = x_nhwc.shape
    th = _largest_divisor_leq(h, row_tile)
    win = min(h, th + 12)
    return pl.pallas_call(
        _spp_cv5_kernel,
        out_shape=jax.ShapeDtypeStruct((n, h, wd, c), jnp.bfloat16),
        grid=(n, h // th),
        in_specs=[
            pl.BlockSpec((1, h, wd, c), lambda b, r: (b, 0, 0, 0)),
            pl.BlockSpec((c, c), lambda b, r: (0, 0)),
            pl.BlockSpec((1, c), lambda b, r: (0, 0)),
            pl.BlockSpec((1, c), lambda b, r: (0, 0)),
            pl.BlockSpec((4, c, c), lambda b, r: (0, 0, 0)),
            pl.BlockSpec((1, c), lambda b, r: (0, 0)),
            pl.BlockSpec((1, c), lambda b, r: (0, 0)),
        ],
        out_specs=pl.BlockSpec((1, th, wd, c), lambda b, r: (b, r, 0, 0)),
        scratch_shapes=[pltpu.VMEM((1, win + 4, wd + 4, c), jnp.bfloat16)],
        compiler_params=_compiler_params(2),
    )(x_nhwc, w4, s4, b4, w5, s5, b5)


def cat_bn_mish_pointwise(y1_2d, y2_2d, sbn1, bbn1, sbn2, bbn2,
                          w7a, w7b, s7, b7, *, row_tile=1024):
    m, c_ = y1_2d.shape
    c2 = w7a.shape[1]
    tm = _choose_row_tile(m, row_tile)
    return pl.pallas_call(
        _cat_bn_mish_pw_kernel,
        out_shape=jax.ShapeDtypeStruct((m, c2), jnp.float32),
        grid=(m // tm,),
        in_specs=[
            pl.BlockSpec((tm, c_), lambda i: (i, 0)),
            pl.BlockSpec((tm, c_), lambda i: (i, 0)),
            pl.BlockSpec((1, c_), lambda i: (0, 0)),
            pl.BlockSpec((1, c_), lambda i: (0, 0)),
            pl.BlockSpec((1, c_), lambda i: (0, 0)),
            pl.BlockSpec((1, c_), lambda i: (0, 0)),
            pl.BlockSpec((c_, c2), lambda i: (0, 0)),
            pl.BlockSpec((c_, c2), lambda i: (0, 0)),
            pl.BlockSpec((1, c2), lambda i: (0, 0)),
            pl.BlockSpec((1, c2), lambda i: (0, 0)),
        ],
        out_specs=pl.BlockSpec((tm, c2), lambda i: (i, 0)),
        compiler_params=_compiler_params(1),
    )(y1_2d, y2_2d, sbn1, bbn1, sbn2, bbn2, w7a, w7b, s7, b7)


# ----------------------------- parameters ------------------------------------

def _folded_bn(key, c, eps=1e-5):
    k1, k2, k3, k4 = jax.random.split(key, 4)
    gamma = 1.0 + 0.1 * jax.random.normal(k1, (c,))
    beta = 0.1 * jax.random.normal(k2, (c,))
    mean = 0.1 * jax.random.normal(k3, (c,))
    var = 0.5 + jax.random.uniform(k4, (c,))
    scale = gamma / jnp.sqrt(var + eps)
    bias = beta - mean * scale
    return (scale.reshape(1, c).astype(jnp.float32),
            bias.reshape(1, c).astype(jnp.float32))


def init_sppcsp_params(key, c1, c2, e=0.5):
    # TODO(synk): for deployment with c2 < 128, pad channel dims to 128 so the
    # kernels' output stores are lane-dense; demo keeps the module's shapes.
    c_ = int(2 * c2 * e)
    keys = jax.random.split(key, 16)

    def w(k, shape):
        return (0.1 * jax.random.normal(k, shape)).astype(jnp.bfloat16)

    p = {"c_": c_, "c2": c2}
    p["w1"] = w(keys[0], (c1, c_));        p["s1"], p["b1"] = _folded_bn(keys[1], c_)
    p["w2"] = w(keys[2], (c1, c_))          # cv2: plain conv, no BN / act
    p["w3"] = w(keys[3], (3, 3, c_, c_));  p["s3"], p["b3"] = _folded_bn(keys[4], c_)
    p["w4"] = w(keys[5], (c_, c_));        p["s4"], p["b4"] = _folded_bn(keys[6], c_)
    p["w5"] = w(keys[7], (4, c_, c_));     p["s5"], p["b5"] = _folded_bn(keys[8], c_)
    p["w6"] = w(keys[9], (3, 3, c_, c_));  p["s6"], p["b6"] = _folded_bn(keys[10], c_)
    p["sbn"], p["bbn"] = _folded_bn(keys[11], 2 * c_)    # standalone self.bn
    p["w7"] = w(keys[12], (2, c_, c2));    p["s7"], p["b7"] = _folded_bn(keys[13], c2)
    return p


# ----------------------------- forward ---------------------------------------

def sppcsp_forward(x_nchw, p, *, conv_rows=16, spp_rows=32, pw_rows=1024):
    n, c1, h, wd = x_nchw.shape
    c_, c2 = p["c_"], p["c2"]
    x = jnp.transpose(x_nchw, (0, 2, 3, 1)).astype(jnp.bfloat16)   # NHWC bf16
    m = n * h * wd
    x2d = x.reshape(m, c1)
    ones = jnp.ones((1, c_), jnp.float32)
    zeros = jnp.zeros((1, c_), jnp.float32)

    # cv3(cv1(x))
    t = pointwise_conv(x2d, p["w1"], p["s1"], p["b1"], apply_act=True,
                       row_tile=pw_rows)
    t = conv3x3_bn_mish(t.reshape(n, h, wd, c_), p["w3"], p["s3"], p["b3"],
                        row_tile=conv_rows)

    # cv5(cat([cv4(t)] + pools)):  cv4 + SPP cascade + cv5 fused in one kernel
    z = spp_cv4_cv5_bn_mish(t, p["w4"], p["s4"], p["b4"],
                            p["w5"], p["s5"], p["b5"], row_tile=spp_rows)

    # y1 = cv6(z)
    y1 = conv3x3_bn_mish(z, p["w6"], p["s6"], p["b6"], row_tile=conv_rows)

    # y2 = cv2(x)  (plain 1x1 conv, no BN, no activation)
    y2 = pointwise_conv(x2d, p["w2"], ones, zeros, apply_act=False,
                        row_tile=pw_rows)

    # cv7(mish(bn(cat(y1, y2)))) fused, with w7 split into two halves
    sbn1, sbn2 = p["sbn"][:, :c_], p["sbn"][:, c_:]
    bbn1, bbn2 = p["bbn"][:, :c_], p["bbn"][:, c_:]
    out = cat_bn_mish_pointwise(y1.reshape(m, c_), y2, sbn1, bbn1, sbn2, bbn2,
                                p["w7"][0], p["w7"][1], p["s7"], p["b7"],
                                row_tile=pw_rows)
    return jnp.transpose(out.reshape(n, h, wd, c2), (0, 3, 1, 2))   # NCHW


# ----------------------------- pure-JAX reference ----------------------------

def sppcsp_reference(x_nchw, p):
    """f32 reference with exact Mish and direct k=5/9/13 pools."""
    f32 = lambda a: a.astype(jnp.float32)
    mish = lambda v: v * jnp.tanh(jax.nn.softplus(v))
    x = jnp.transpose(x_nchw, (0, 2, 3, 1)).astype(jnp.float32)

    def pw(v, w, s=None, b=None, act=False):
        y = jnp.einsum("nhwc,cd->nhwd", v, f32(w))
        if s is not None:
            y = y * s.reshape(1, 1, 1, -1) + b.reshape(1, 1, 1, -1)
        return mish(y) if act else y

    def conv3(v, w, s, b):
        y = lax.conv_general_dilated(v, f32(w), (1, 1), "SAME",
                                     dimension_numbers=("NHWC", "HWIO", "NHWC"))
        return mish(y * s.reshape(1, 1, 1, -1) + b.reshape(1, 1, 1, -1))

    def mp(v, k):
        return lax.reduce_window(v, -jnp.inf, lax.max, (1, k, k, 1),
                                 (1, 1, 1, 1), "SAME")

    t = pw(x, p["w1"], p["s1"], p["b1"], act=True)
    t = conv3(t, p["w3"], p["s3"], p["b3"])
    x1 = pw(t, p["w4"], p["s4"], p["b4"], act=True)
    cat = jnp.concatenate([x1, mp(x1, 5), mp(x1, 9), mp(x1, 13)], axis=-1)
    w5 = jnp.concatenate([f32(p["w5"][i]) for i in range(4)], axis=0)
    z = pw(cat, w5, p["s5"], p["b5"], act=True)
    y1 = conv3(z, p["w6"], p["s6"], p["b6"])
    y2 = pw(x, p["w2"])
    a = mish(jnp.concatenate([y1, y2], axis=-1) * p["sbn"].reshape(1, 1, 1, -1)
             + p["bbn"].reshape(1, 1, 1, -1))
    w7 = jnp.concatenate([f32(p["w7"][0]), f32(p["w7"][1])], axis=0)
    out = pw(a, w7, p["s7"], p["b7"], act=True)
    return jnp.transpose(out, (0, 3, 1, 2))


# ----------------------------- main -------------------------------------------

if __name__ == "__main__":
    key = jax.random.PRNGKey(0)
    k_x, k_p = jax.random.split(key)

    N, C1, H, W = 2, 4, 16, 16
    C2 = 4
    x = jax.random.normal(k_x, (N, C1, H, W), dtype=jnp.float32)
    params = init_sppcsp_params(k_p, C1, C2)

    # Small row tiles so the multi-strip (halo) paths are exercised even at
    # this toy 16x16 spatial size.
    out = sppcsp_forward(x, params, conv_rows=8, spp_rows=8, pw_rows=256)
    out = jax.block_until_ready(out)

    assert out.shape == (N, C2, H, W), out.shape
    assert bool(jnp.all(jnp.isfinite(out)))

    # Validate against a pure-JAX f32 reference.  bf16 MXU + approx-reciprocal
    # Mish in the kernels => loose (scale-relative) tolerance.
    ref = sppcsp_reference(x, params)
    err = float(jnp.max(jnp.abs(out - ref)))
    scl = float(jnp.max(jnp.abs(ref)))
    assert err <= 0.15 * scl + 5e-3, (err, scl)

    print("KERNEL_OK")
</pallas_src>

<mosaic_0001>
module attributes {stable_mosaic.version = 11 : i64} {
  func.func @_pw_kernel(%arg0: i32, %arg1: memref<256x4xbf16, #tpu.memory_space<vmem>>, %arg2: memref<4x4xbf16, #tpu.memory_space<vmem>>, %arg3: memref<1x4xf32, #tpu.memory_space<vmem>>, %arg4: memref<1x4xf32, #tpu.memory_space<vmem>>, %arg5: memref<256x4xbf16, #tpu.memory_space<vmem>>) attributes {dimension_semantics = [#tpu.dimension_semantics<parallel>], iteration_bounds = array<i64: 2>, scalar_prefetch = 0 : i64, scratch_operands = 0 : i64, tpu.core_type = #tpu.core_type<tc>, window_params = [{transform_indices = @transform_0, window_bounds = array<i64: 256, 4>}, {pipeline_mode = #tpu.pipeline_mode<synchronous>, transform_indices = @transform_1, window_bounds = array<i64: 4, 4>}, {pipeline_mode = #tpu.pipeline_mode<synchronous>, transform_indices = @transform_2, window_bounds = array<i64: 1, 4>}, {pipeline_mode = #tpu.pipeline_mode<synchronous>, transform_indices = @transform_3, window_bounds = array<i64: 1, 4>}, {transform_indices = @transform_4, window_bounds = array<i64: 256, 4>}]} {
    %c0 = arith.constant 0 : index
    %c0_0 = arith.constant 0 : index
    %0 = vector.load %arg1[%c0, %c0_0] : memref<256x4xbf16, #tpu.memory_space<vmem>>, vector<256x4xbf16>
    %c0_1 = arith.constant 0 : index
    %c0_2 = arith.constant 0 : index
    %1 = vector.load %arg2[%c0_1, %c0_2] : memref<4x4xbf16, #tpu.memory_space<vmem>>, vector<4x4xbf16>
    %cst = arith.constant dense<0.000000e+00> : vector<256x4xf32>
    %2 = tpu.matmul %0, %1, %cst {dimension_numbers = #tpu.dot_dimension_numbers<[1], [0], [0], [1], [0, 0, 1, 1], [], []>} : vector<256x4xbf16>, vector<4x4xbf16>, vector<256x4xf32> -> vector<256x4xf32>
    %c0_3 = arith.constant 0 : index
    %c0_4 = arith.constant 0 : index
    %3 = vector.load %arg3[%c0_3, %c0_4] : memref<1x4xf32, #tpu.memory_space<vmem>>, vector<1x4xf32>
    %4 = vector.broadcast %3 : vector<1x4xf32> to vector<256x4xf32>
    %5 = arith.mulf %2, %4 : vector<256x4xf32>
    %c0_5 = arith.constant 0 : index
    %c0_6 = arith.constant 0 : index
    %6 = vector.load %arg4[%c0_5, %c0_6] : memref<1x4xf32, #tpu.memory_space<vmem>>, vector<1x4xf32>
    %7 = vector.broadcast %6 : vector<1x4xf32> to vector<256x4xf32>
    %8 = arith.addf %5, %7 : vector<256x4xf32>
    %cst_7 = arith.constant 2.000000e+01 : f32
    %9 = vector.broadcast %cst_7 : f32 to vector<256x4xf32>
    %10 = arith.minimumf %8, %9 : vector<256x4xf32>
    %11 = math.exp %10 : vector<256x4xf32>
    %cst_8 = arith.constant 2.000000e+00 : f32
    %12 = vector.broadcast %cst_8 : f32 to vector<256x4xf32>
    %13 = arith.addf %11, %12 : vector<256x4xf32>
    %14 = arith.mulf %11, %13 : vector<256x4xf32>
    %15 = arith.mulf %8, %14 : vector<256x4xf32>
    %cst_9 = arith.constant 2.000000e+00 : f32
    %16 = vector.broadcast %cst_9 : f32 to vector<256x4xf32>
    %17 = arith.addf %14, %16 : vector<256x4xf32>
    %18 = tpu.reciprocal %17 {approx = true} : vector<256x4xf32> -> vector<256x4xf32>
    %19 = arith.mulf %15, %18 : vector<256x4xf32>
    %20 = arith.truncf %19 : vector<256x4xf32> to vector<256x4xbf16>
    %c0_10 = arith.constant 0 : index
    %c0_11 = arith.constant 0 : index
    %21 = vector.load %arg5[%c0_10, %c0_11] : memref<256x4xbf16, #tpu.memory_space<vmem>>, vector<256x4xbf16>
    tpu.vector_store %arg5[%c0_10, %c0_11], %20 {strides = array<i32>} : memref<256x4xbf16, #tpu.memory_space<vmem>>, vector<256x4xbf16>,
    return
  }
  func.func @transform_0(%arg0: i32) -> (i32, i32) {
    %c0_i32 = arith.constant 0 : i32
    %c0_i32_0 = arith.constant 0 : i32
    return %arg0, %c0_i32 : i32, i32
  }
  func.func @transform_1(%arg0: i32) -> (i32, i32) {
    %c0_i32 = arith.constant 0 : i32
    %c0_i32_0 = arith.constant 0 : i32
    %c0_i32_1 = arith.constant 0 : i32
    return %c0_i32, %c0_i32_0 : i32, i32
  }
  func.func @transform_2(%arg0: i32) -> (i32, i32) {
    %c0_i32 = arith.constant 0 : i32
    %c0_i32_0 = arith.constant 0 : i32
    %c0_i32_1 = arith.constant 0 : i32
    return %c0_i32, %c0_i32_0 : i32, i32
  }
  func.func @transform_3(%arg0: i32) -> (i32, i32) {
    %c0_i32 = arith.constant 0 : i32
    %c0_i32_0 = arith.constant 0 : i32
    %c0_i32_1 = arith.constant 0 : i32
    return %c0_i32, %c0_i32_0 : i32, i32
  }
  func.func @transform_4(%arg0: i32) -> (i32, i32) {
    %c0_i32 = arith.constant 0 : i32
    %c0_i32_0 = arith.constant 0 : i32
    return %arg0, %c0_i32 : i32, i32
  }
}

</mosaic_0001>

<llo_original>
// kernel: tpu_custom_call.1
$region0: #{tpu_custom_call.1}
  #allocation0 [shape = 'u32[]', space=smem, size = 0x4, offset = 0x4, fixed_abs, tag = 'smem constant byte address 0x4 - core index']
  #allocation1 [shape = 'u32[144,128]{1,0:T(1,128)}', space=vmem, size = 0x12000, scoped, tag = 'internal scratch']
  %s0 = inlined_call_operand.vmem [shape: bf16[512,4], index: 0, kind: input, shape index: {}]
  %s1 = inlined_call_operand.vmem [shape: bf16[4,4], index: 1, kind: input, shape index: {}]
  %s2 = inlined_call_operand.vmem [shape: f32[1,4], index: 2, kind: input, shape index: {}]
  %s3 = inlined_call_operand.vmem [shape: f32[1,4], index: 3, kind: input, shape index: {}]
  %s4 = inlined_call_operand.vmem [shape: bf16[512,4], index: 4, kind: output, shape index: {}]
  %s5 = sld [smem:[#allocation0]]
  $region49: #{tpu_custom_call.1} parent=0
    _
  %s7 = ssub.s32 1, %s5
  %s8 = scalar_select 0, %s7, %s5
  loop: start=0, step=1, limit=4
  $region2: #{tpu_custom_call.1} parent=0 // loop_pre_header
    _
  $region3: #{tpu_custom_call.1} parent=0 // loop_header
    %s10 = sphi 0, %s14
    %p11 = scmp.ge.s32.totalorder %s10, 4
    %s20 = sphi 0, %s22
    %s23 = sphi 0, %s20
    %s24 = sphi 0, %s23
    %s40 = sphi 0, %s24
    %s44 = sphi 0, %s44
    %s46 = sphi 0, %s44
    %s47 = sphi 0, %s46
    %s61 = sphi 0, %s47
    %s65 = sphi 0, %s65
    %s67 = sphi 0, %s65
    %s68 = sphi 0, %s67
    %s82 = sphi 0, %s68
    %s86 = sphi 0, %s86
    %s88 = sphi 0, %s86
    %s89 = sphi 0, %s88
    %s103 = sphi 0, %s89
    %s109 = sphi 0, %s111
    %s112 = sphi 0, %s109
    %s113 = sphi 0, %s112
    %s129 = sphi 0, %s113
  $region4: #{tpu_custom_call.1} parent=0 // loop_header_branch
    %13 = sbr.rel (%p11) target = $region8
  $region5: #{tpu_custom_call.1} parent=0 // loop_body
    %s15 = ssub.s32 %s10, 1
    %s16 = ssub.s32 %s10, 2
    %s17 = sadd.s32 %s10, 1
    %s18 = ssub.s32 %s10, %s17
    %p19 = scmp.eq.s32.totalorder %s18, 0
    %s21 = sadd.s32 %s20, 1
    %s22 = scalar_select %p19, %s20, %s21
    %p25 = pneg %p19
    %p26 = scmp.eq.s32.totalorder %s10, 1
    %p27 = por %p25, %p26
    %p28 = scmp.ne.s32.totalorder %s20, %s23
    %p29 = scmp.eq.s32.totalorder %s10, 0
    %p30 = por %p28, %p29
    %p31 = scmp.ne.s32.totalorder %s20, %s23
    %p32 = scmp.eq.s32.totalorder %s15, 1
    %p33 = por %p31, %p32
    %p34 = scmp.ne.s32.totalorder %s23, %s24
    %p35 = scmp.eq.s32.totalorder %s15, 0
    %p36 = por %p34, %p35
    %p37 = scmp.ne.s32.totalorder %s23, %s24
    %p38 = scmp.eq.s32.totalorder %s16, 1
    %p39 = por %p37, %p38
    %p41 = scmp.ne.s32.totalorder %s24, %s40
    %p42 = scmp.eq.s32.totalorder %s16, 0
    %p43 = por %p41, %p42
    %s45 = sadd.s32 %s44, 1
    %p48 = scmp.eq.s32.totalorder %s10, 1
    %p49 = scmp.ne.s32.totalorder %s44, %s46
    %p50 = scmp.eq.s32.totalorder %s10, 0
    %p51 = por %p49, %p50
    %p52 = scmp.ne.s32.totalorder %s44, %s46
    %p53 = scmp.eq.s32.totalorder %s15, 1
    %p54 = por %p52, %p53
    %p55 = scmp.ne.s32.totalorder %s46, %s47
    %p56 = scmp.eq.s32.totalorder %s15, 0
    %p57 = por %p55, %p56
    %p58 = scmp.ne.s32.totalorder %s46, %s47
    %p59 = scmp.eq.s32.totalorder %s16, 1
    %p60 = por %p58, %p59
    %p62 = scmp.ne.s32.totalorder %s47, %s61
    %p63 = scmp.eq.s32.totalorder %s16, 0
    %p64 = por %p62, %p63
    %s66 = sadd.s32 %s65, 1
    %p69 = scmp.eq.s32.totalorder %s10, 1
    %p70 = scmp.ne.s32.totalorder %s65, %s67
    %p71 = scmp.eq.s32.totalorder %s10, 0
    %p72 = por %p70, %p71
    %p73 = scmp.ne.s32.totalorder %s65, %s67
    %p74 = scmp.eq.s32.totalorder %s15, 1
    %p75 = por %p73, %p74
    %p76 = scmp.ne.s32.totalorder %s67, %s68
    %p77 = scmp.eq.s32.totalorder %s15, 0
    %p78 = por %p76, %p77
    %p79 = scmp.ne.s32.totalorder %s67, %s68
    %p80 = scmp.eq.s32.totalorder %s16, 1
    %p81 = por %p79, %p80
    %p83 = scmp.ne.s32.totalorder %s68, %s82
    %p84 = scmp.eq.s32.totalorder %s16, 0
    %p85 = por %p83, %p84
    %s87 = sadd.s32 %s86, 1
    %p90 = scmp.eq.s32.totalorder %s10, 1
    %p91 = scmp.ne.s32.totalorder %s86, %s88
    %p92 = scmp.eq.s32.totalorder %s10, 0
    %p93 = por %p91, %p92
    %p94 = scmp.ne.s32.totalorder %s86, %s88
    %p95 = scmp.eq.s32.totalorder %s15, 1
    %p96 = por %p94, %p95
    %p97 = scmp.ne.s32.totalorder %s88, %s89
    %p98 = scmp.eq.s32.totalorder %s15, 0
    %p99 = por %p97, %p98
    %p100 = scmp.ne.s32.totalorder %s88, %s89
    %p101 = scmp.eq.s32.totalorder %s16, 1
    %p102 = por %p100, %p101
    %p104 = scmp.ne.s32.totalorder %s89, %s103
    %p105 = scmp.eq.s32.totalorder %s16, 0
    %p106 = por %p104, %p105
    %s107 = ssub.s32 %s10, %s17
    %p108 = scmp.eq.s32.totalorder %s107, 0
    %s110 = sadd.s32 %s109, 1
    %s111 = scalar_select %p108, %s109, %s110
    %p114 = pneg %p108
    %p115 = scmp.eq.s32.totalorder %s10, 1
    %p116 = por %p114, %p115
    %p117 = scmp.ne.s32.totalorder %s109, %s112
    %p118 = scmp.eq.s32.totalorder %s10, 0
    %p119 = por %p117, %p118
    %p120 = scmp.ne.s32.totalorder %s109, %s112
    %p121 = scmp.eq.s32.totalorder %s15, 1
    %p122 = por %p120, %p121
    %p123 = scmp.ne.s32.totalorder %s112, %s113
    %p124 = scmp.eq.s32.totalorder %s15, 0
    %p125 = por %p123, %p124
    %p126 = scmp.ne.s32.totalorder %s112, %s113
    %p127 = scmp.eq.s32.totalorder %s16, 1
    %p128 = por %p126, %p127
    %p130 = scmp.ne.s32.totalorder %s113, %s129
    %p131 = scmp.eq.s32.totalorder %s16, 0
    %p132 = por %p130, %p131
    %p133 = scmp.le.s32.totalorder 1, %s10
    %p134 = scmp.lt.s32.totalorder %s10, 3
    %p135 = pnand %p133, %p134
    %p136 = pneg %p135
    // Predicated region
    $region9: #{tpu_custom_call.1} parent=5 // pred_check
      _
    $region10: #{tpu_custom_call.1} parent=5 // pred_check_branch
      %138 = sbr.rel (%p135) target = $region12
    $region11: #{tpu_custom_call.1} parent=5 // pred_region
      %s139 = ssub.s32 %s10, 1
      // Predicated region
      $region13: #{tpu_custom_call.1} parent=11 // pred_check
        %p140 = pneg %p57
      $region14: #{tpu_custom_call.1} parent=11 // pred_check_branch
        %142 = sbr.rel (%p140) target = $region16
      $region15: #{tpu_custom_call.1} parent=11 // pred_region
        _
      $region16: #{tpu_custom_call.1} parent=11 // pred_fallthru
        _
      // Predicated region
      $region17: #{tpu_custom_call.1} parent=11 // pred_check
        %p143 = pneg %p78
      $region18: #{tpu_custom_call.1} parent=11 // pred_check_branch
        %145 = sbr.rel (%p143) target = $region20
      $region19: #{tpu_custom_call.1} parent=11 // pred_region
        _
      $region20: #{tpu_custom_call.1} parent=11 // pred_fallthru
        _
      // Predicated region
      $region21: #{tpu_custom_call.1} parent=11 // pred_check
        %p146 = pneg %p99
      $region22: #{tpu_custom_call.1} parent=11 // pred_check_branch
        %148 = sbr.rel (%p146) target = $region24
      $region23: #{tpu_custom_call.1} parent=11 // pred_region
        _
      $region24: #{tpu_custom_call.1} parent=11 // pred_fallthru
        _
    $region12: #{tpu_custom_call.1} parent=5 // pred_fallthru
      _
    %p149 = scmp.lt.s32.totalorder %s10, 2
    // Predicated region
    $region25: #{tpu_custom_call.1} parent=5 // pred_check
      %p150 = pneg %p149
    $region26: #{tpu_custom_call.1} parent=5 // pred_check_branch
      %152 = sbr.rel (%p150) target = $region28
    $region27: #{tpu_custom_call.1} parent=5 // pred_region
      // Predicated region
      $region29: #{tpu_custom_call.1} parent=27 // pred_check
        %p153 = pneg %p30
      $region30: #{tpu_custom_call.1} parent=27 // pred_check_branch
        %155 = sbr.rel (%p153) target = $region32
      $region31: #{tpu_custom_call.1} parent=27 // pred_region
        %s156 = smul.u32 32, %s10
        %p157 = scmp.lt.s32.totalorder %s156, 63
        %s158 = scalar_select %p157, %s156, 63
        %s159 = smul.addr %s158, 4
        %s160 = scalar_lea.vmem %s0, %s159
        %s161 = smul.u32 32, %s10
      $region32: #{tpu_custom_call.1} parent=27 // pred_fallthru
        _
    $region28: #{tpu_custom_call.1} parent=5 // pred_fallthru
      _
    %p162 = scmp.le.s32.totalorder 1, %s10
    %p163 = scmp.lt.s32.totalorder %s10, 3
    %p164 = pnand %p162, %p163
    %p165 = pneg %p164
    // Predicated region
    $region33: #{tpu_custom_call.1} parent=5 // pred_check
      _
    $region34: #{tpu_custom_call.1} parent=5 // pred_check_branch
      %167 = sbr.rel (%p164) target = $region36
    $region35: #{tpu_custom_call.1} parent=5 // pred_region
      %s168 = ssub.s32 %s10, 1
      %s169 = smul.u32 32, %s15
      %p170 = scmp.lt.s32.totalorder %s169, 63
      %s171 = scalar_select %p170, %s169, 63
      %s172 = smul.addr %s171, 4
      %s173 = scalar_lea.vmem %s0, %s172
      %p174 = pneg %p36
      %p175 = pneg %p33
      %p176 = pneg %p57
      %p177 = pneg %p54
      %p178 = pneg %p78
      %p179 = pneg %p75
      %p180 = pneg %p99
      %p181 = pneg %p96
      %p182 = pneg %p125
      %p183 = pneg %p122
      %s184 = smul.u32 32, %s15
      %p185 = scmp.lt.s32.totalorder %s184, 63
      %s186 = scalar_select %p185, %s184, 63
      %s187 = smul.addr %s186, 4
      %s188 = scalar_lea.vmem %s4, %s187
      %s189 = smul.u32 32, %s15
      %p190 = scmp.lt.s32.totalorder %s189, 63
      %s191 = scalar_select %p190, %s189, 63
      %s192 = smul.addr %s191, 4
      %s193 = scalar_lea.vmem %s0, %s192
      %s194 = smul.u32 32, %s15
      %s195 = smul.u32 32, %s15
      %p196 = scmp.lt.s32.totalorder %s195, 63
      %s197 = scalar_select %p196, %s195, 63
      %s198 = smul.addr %s197, 4
      %s199 = scalar_lea.vmem %s4, %s198
      %s200 = smul.u32 32, %s15
      %v202 = vld [vmem:[%s193] sm:$0xf]
      %v203 = vld [vmem:[%s193 + $0x4] sm:$0xf]
      %v204 = vld [vmem:[%s193 + $0x8] sm:$0xf]
      %v205 = vld [vmem:[%s193 + $0xc] sm:$0xf]
      %v206 = vld [vmem:[%s193 + $0x10] sm:$0xf]
      %v207 = vld [vmem:[%s193 + $0x14] sm:$0xf]
      %v208 = vld [vmem:[%s193 + $0x18] sm:$0xf]
      %v209 = vld [vmem:[%s193 + $0x1c] sm:$0xf]
      %v210 = vld [vmem:[%s193 + $0x20] sm:$0xf]
      %v211 = vld [vmem:[%s193 + $0x24] sm:$0xf]
      %v212 = vld [vmem:[%s193 + $0x28] sm:$0xf]
      %v213 = vld [vmem:[%s193 + $0x2c] sm:$0xf]
      %v214 = vld [vmem:[%s193 + $0x30] sm:$0xf]
      %v215 = vld [vmem:[%s193 + $0x34] sm:$0xf]
      %v216 = vld [vmem:[%s193 + $0x38] sm:$0xf]
      %v217 = vld [vmem:[%s193 + $0x3c] sm:$0xf]
      %v218 = vld [vmem:[%s193 + $0x40] sm:$0xf]
      %v219 = vld [vmem:[%s193 + $0x44] sm:$0xf]
      %v220 = vld [vmem:[%s193 + $0x48] sm:$0xf]
      %v221 = vld [vmem:[%s193 + $0x4c] sm:$0xf]
      %v222 = vld [vmem:[%s193 + $0x50] sm:$0xf]
      %v223 = vld [vmem:[%s193 + $0x54] sm:$0xf]
      %v224 = vld [vmem:[%s193 + $0x58] sm:$0xf]
      %v225 = vld [vmem:[%s193 + $0x5c] sm:$0xf]
      %v226 = vld [vmem:[%s193 + $0x60] sm:$0xf]
      %v227 = vld [vmem:[%s193 + $0x64] sm:$0xf]
      %v228 = vld [vmem:[%s193 + $0x68] sm:$0xf]
      %v229 = vld [vmem:[%s193 + $0x6c] sm:$0xf]
      %v230 = vld [vmem:[%s193 + $0x70] sm:$0xf]
      %v231 = vld [vmem:[%s193 + $0x74] sm:$0xf]
      %v232 = vld [vmem:[%s193 + $0x78] sm:$0xf]
      %v233 = vld [vmem:[%s193 + $0x7c] sm:$0xf]
      %v234 = vld [vmem:[%s1] sm:$0x3]
      %v267 = vunpack.c.l.b16 %v202
      %v268 = vunpack.c.l.b16 %v203
      %v269 = vunpack.c.l.b16 %v204
      %v270 = vunpack.c.l.b16 %v205
      %v271 = vunpack.c.l.b16 %v206
      %v272 = vunpack.c.l.b16 %v207
      %v273 = vunpack.c.l.b16 %v208
      %v274 = vunpack.c.l.b16 %v209
      %v275 = vunpack.c.l.b16 %v210
      %v276 = vunpack.c.l.b16 %v211
      %v277 = vunpack.c.l.b16 %v212
      %v278 = vunpack.c.l.b16 %v213
      %v279 = vunpack.c.l.b16 %v214
      %v280 = vunpack.c.l.b16 %v215
      %v281 = vunpack.c.l.b16 %v216
      %v282 = vunpack.c.l.b16 %v217
      %v283 = vunpack.c.l.b16 %v218
      %v284 = vunpack.c.l.b16 %v219
      %v285 = vunpack.c.l.b16 %v220
      %v286 = vunpack.c.l.b16 %v221
      %v287 = vunpack.c.l.b16 %v222
      %v288 = vunpack.c.l.b16 %v223
      %v289 = vunpack.c.l.b16 %v224
      %v290 = vunpack.c.l.b16 %v225
      %v291 = vunpack.c.l.b16 %v226
      %v292 = vunpack.c.l.b16 %v227
      %v293 = vunpack.c.l.b16 %v228
      %v294 = vunpack.c.l.b16 %v229
      %v295 = vunpack.c.l.b16 %v230
      %v296 = vunpack.c.l.b16 %v231
      %v297 = vunpack.c.l.b16 %v232
      %v298 = vunpack.c.l.b16 %v233
      %v299 = vpack.c.b16 %v268, %v267
      %v300 = vpack.c.b16 %v270, %v269
      %v301 = vpack.c.b16 %v272, %v271
      %v302 = vpack.c.b16 %v274, %v273
      %v303 = vpack.c.b16 %v276, %v275
      %v304 = vpack.c.b16 %v278, %v277
      %v305 = vpack.c.b16 %v280, %v279
      %v306 = vpack.c.b16 %v282, %v281
      %v307 = vpack.c.b16 %v284, %v283
      %v308 = vpack.c.b16 %v286, %v285
      %v309 = vpack.c.b16 %v288, %v287
      %v310 = vpack.c.b16 %v290, %v289
      %v311 = vpack.c.b16 %v292, %v291
      %v312 = vpack.c.b16 %v294, %v293
      %v313 = vpack.c.b16 %v296, %v295
      %v314 = vpack.c.b16 %v298, %v297
      %vm315 = vcmask 31744
      %v317 = vsel %vm315, %v299, 0
      %v320 = vsel %vm315, %v300, 0
      %v323 = vsel %vm315, %v301, 0
      %v326 = vsel %vm315, %v302, 0
      %v329 = vsel %vm315, %v303, 0
      %v332 = vsel %vm315, %v304, 0
      %v335 = vsel %vm315, %v305, 0
      %v338 = vsel %vm315, %v306, 0
      %v341 = vsel %vm315, %v307, 0
      %v344 = vsel %vm315, %v308, 0
      %v347 = vsel %vm315, %v309, 0
      %v350 = vsel %vm315, %v310, 0
      %v353 = vsel %vm315, %v311, 0
      %v356 = vsel %vm315, %v312, 0
      %v359 = vsel %vm315, %v313, 0
      %v362 = vsel %vm315, %v314, 0
      %vm364 = vcmask 1041408
      %v366 = vsel %vm364, %v234, 0
      %368 = vmatprep.subr.bf16.mxu0 0
      %369 = vmatpush1.bf16.msra.mxu0 0
      %370 = vmatprep.subr.bf16.mxu0 0
      %371 = vmatpush1.bf16.msra.mxu0 0
      %372 = vmatprep.subr.bf16.mxu0 0
      %373 = vmatpush1.bf16.msra.mxu0 0
      %374 = vmatprep.subr.bf16.mxu0 0
      %375 = vmatpush1.bf16.msra.mxu0 0
      %376 = vmatprep.subr.bf16.mxu0 0
      %377 = vmatpush1.bf16.msra.mxu0 0
      %378 = vmatprep.subr.bf16.mxu0 0
      %379 = vmatpush1.bf16.msra.mxu0 0
      %380 = vmatprep.subr.bf16.mxu0 0
      %381 = vmatpush1.bf16.msra.mxu0 0
      %382 = vmatprep.subr.bf16.mxu0 0
      %383 = vmatpush1.bf16.msra.mxu0 %v366
      %384 = vmatprep.subr.bf16.mxu0 0
      %385 = vmatpush2.bf16.msra.mxu0 0
      %386 = vmatprep.subr.bf16.mxu0 0
      %387 = vmatpush2.bf16.msra.mxu0 0
      %388 = vmatprep.subr.bf16.mxu0 0
      %389 = vmatpush2.bf16.msra.mxu0 0
      %390 = vmatprep.subr.bf16.mxu0 0
      %391 = vmatpush2.bf16.msra.mxu0 0
      %392 = vmatprep.subr.bf16.mxu0 0
      %393 = vmatpush2.bf16.msra.mxu0 0
      %394 = vmatprep.subr.bf16.mxu0 0
      %395 = vmatpush2.bf16.msra.mxu0 0
      %396 = vmatprep.subr.bf16.mxu0 0
      %397 = vmatpush2.bf16.msra.mxu0 0
      %398 = vmatprep.subr.bf16.mxu0 0
      %399 = vmatpush2.bf16.msra.mxu0 0
      %400 = vmatprep.mubr.bf16.mxu0 0
      %401 = vmatmul.mubr.bf16.gmra.mxu0 %v317
      %v402 = vpop.f32.mrf.mxu0
      %v403 = vadd.f32 0.0, %v402
      %v404 = vpop.f32.mrf.mxu0
      %v405 = vpop.f32.mrf.mxu0
      %v406 = vadd.f32 0.0, %v405
      %v407 = vpop.f32.mrf.mxu0
      %408 = vmatprep.mubr.bf16.mxu0 0
      %409 = vmatmul.mubr.bf16.gmra.mxu0 %v320
      %v410 = vpop.f32.mrf.mxu0
      %v411 = vadd.f32 0.0, %v410
      %v412 = vpop.f32.mrf.mxu0
      %v413 = vpop.f32.mrf.mxu0
      %v414 = vadd.f32 0.0, %v413
      %v415 = vpop.f32.mrf.mxu0
      %416 = vmatprep.mubr.bf16.mxu0 0
      %417 = vmatmul.mubr.bf16.gmra.mxu0 %v323
      %v418 = vpop.f32.mrf.mxu0
      %v419 = vadd.f32 0.0, %v418
      %v420 = vpop.f32.mrf.mxu0
      %v421 = vpop.f32.mrf.mxu0
      %v422 = vadd.f32 0.0, %v421
      %v423 = vpop.f32.mrf.mxu0
      %424 = vmatprep.mubr.bf16.mxu0 0
      %425 = vmatmul.mubr.bf16.gmra.mxu0 %v326
      %v426 = vpop.f32.mrf.mxu0
      %v427 = vadd.f32 0.0, %v426
      %v428 = vpop.f32.mrf.mxu0
      %v429 = vpop.f32.mrf.mxu0
      %v430 = vadd.f32 0.0, %v429
      %v431 = vpop.f32.mrf.mxu0
      %432 = vmatprep.mubr.bf16.mxu0 0
      %433 = vmatmul.mubr.bf16.gmra.mxu0 %v329
      %v434 = vpop.f32.mrf.mxu0
      %v435 = vadd.f32 0.0, %v434
      %v436 = vpop.f32.mrf.mxu0
      %v437 = vpop.f32.mrf.mxu0
      %v438 = vadd.f32 0.0, %v437
      %v439 = vpop.f32.mrf.mxu0
      %440 = vmatprep.mubr.bf16.mxu0 0
      %441 = vmatmul.mubr.bf16.gmra.mxu0 %v332
      %v442 = vpop.f32.mrf.mxu0
      %v443 = vadd.f32 0.0, %v442
      %v444 = vpop.f32.mrf.mxu0
      %v445 = vpop.f32.mrf.mxu0
      %v446 = vadd.f32 0.0, %v445
      %v447 = vpop.f32.mrf.mxu0
      %448 = vmatprep.mubr.bf16.mxu0 0
      %449 = vmatmul.mubr.bf16.gmra.mxu0 %v335
      %v450 = vpop.f32.mrf.mxu0
      %v451 = vadd.f32 0.0, %v450
      %v452 = vpop.f32.mrf.mxu0
      %v453 = vpop.f32.mrf.mxu0
      %v454 = vadd.f32 0.0, %v453
      %v455 = vpop.f32.mrf.mxu0
      %456 = vmatprep.mubr.bf16.mxu0 0
      %457 = vmatmul.mubr.bf16.gmra.mxu0 %v338
      %v458 = vpop.f32.mrf.mxu0
      %v459 = vadd.f32 0.0, %v458
      %v460 = vpop.f32.mrf.mxu0
      %v461 = vpop.f32.mrf.mxu0
      %v462 = vadd.f32 0.0, %v461
      %v463 = vpop.f32.mrf.mxu0
      %464 = vmatprep.mubr.bf16.mxu0 0
      %465 = vmatmul.mubr.bf16.gmra.mxu0 %v341
      %v466 = vpop.f32.mrf.mxu0
      %v467 = vadd.f32 0.0, %v466
      %v468 = vpop.f32.mrf.mxu0
      %v469 = vpop.f32.mrf.mxu0
      %v470 = vadd.f32 0.0, %v469
      %v471 = vpop.f32.mrf.mxu0
      %472 = vmatprep.mubr.bf16.mxu0 0
      %473 = vmatmul.mubr.bf16.gmra.mxu0 %v344
      %v474 = vpop.f32.mrf.mxu0
      %v475 = vadd.f32 0.0, %v474
      %v476 = vpop.f32.mrf.mxu0
      %v477 = vpop.f32.mrf.mxu0
      %v478 = vadd.f32 0.0, %v477
      %v479 = vpop.f32.mrf.mxu0
      %480 = vmatprep.mubr.bf16.mxu0 0
      %481 = vmatmul.mubr.bf16.gmra.mxu0 %v347
      %v482 = vpop.f32.mrf.mxu0
      %v483 = vadd.f32 0.0, %v482
      %v484 = vpop.f32.mrf.mxu0
      %v485 = vpop.f32.mrf.mxu0
      %v486 = vadd.f32 0.0, %v485
      %v487 = vpop.f32.mrf.mxu0
      %488 = vmatprep.mubr.bf16.mxu0 0
      %489 = vmatmul.mubr.bf16.gmra.mxu0 %v350
      %v490 = vpop.f32.mrf.mxu0
      %v491 = vadd.f32 0.0, %v490
      %v492 = vpop.f32.mrf.mxu0
      %v493 = vpop.f32.mrf.mxu0
      %v494 = vadd.f32 0.0, %v493
      %v495 = vpop.f32.mrf.mxu0
      %496 = vmatprep.mubr.bf16.mxu0 0
      %497 = vmatmul.mubr.bf16.gmra.mxu0 %v353
      %v498 = vpop.f32.mrf.mxu0
      %v499 = vadd.f32 0.0, %v498
      %v500 = vpop.f32.mrf.mxu0
      %v501 = vpop.f32.mrf.mxu0
      %v502 = vadd.f32 0.0, %v501
      %v503 = vpop.f32.mrf.mxu0
      %504 = vmatprep.mubr.bf16.mxu0 0
      %505 = vmatmul.mubr.bf16.gmra.mxu0 %v356
      %v506 = vpop.f32.mrf.mxu0
      %v507 = vadd.f32 0.0, %v506
      %v508 = vpop.f32.mrf.mxu0
      %v509 = vpop.f32.mrf.mxu0
      %v510 = vadd.f32 0.0, %v509
      %v511 = vpop.f32.mrf.mxu0
      %512 = vmatprep.mubr.bf16.mxu0 0
      %513 = vmatmul.mubr.bf16.gmra.mxu0 %v359
      %v514 = vpop.f32.mrf.mxu0
      %v515 = vadd.f32 0.0, %v514
      %v516 = vpop.f32.mrf.mxu0
      %v517 = vpop.f32.mrf.mxu0
      %v518 = vadd.f32 0.0, %v517
      %v519 = vpop.f32.mrf.mxu0
      %520 = vmatprep.mubr.bf16.mxu0 0
      %521 = vmatmul.mubr.bf16.gmra.mxu0 %v362
      %v522 = vpop.f32.mrf.mxu0
      %v523 = vadd.f32 0.0, %v522
      %v524 = vpop.f32.mrf.mxu0
      %v525 = vpop.f32.mrf.mxu0
      %v526 = vadd.f32 0.0, %v525
      %v527 = vpop.f32.mrf.mxu0
      %528 = vdwg.mxu0
      %v529 = vld [vmem:[%s2] sm:$0x1]
      %v531 = vlaneseq
      %v532 = vshrl.u32 %v531, 7
      %v533 = vsub.s32 0, %v532
      %v534 = vrot.slane %v529, %v533
      %v536 = vmul.f32 %v403, %v534
      %v537 = vmul.f32 %v406, %v534
      %v538 = vmul.f32 %v411, %v534
      %v539 = vmul.f32 %v414, %v534
      %v540 = vmul.f32 %v419, %v534
      %v541 = vmul.f32 %v422, %v534
      %v542 = vmul.f32 %v427, %v534
      %v543 = vmul.f32 %v430, %v534
      %v544 = vmul.f32 %v435, %v534
      %v545 = vmul.f32 %v438, %v534
      %v546 = vmul.f32 %v443, %v534
      %v547 = vmul.f32 %v446, %v534
      %v548 = vmul.f32 %v451, %v534
      %v549 = vmul.f32 %v454, %v534
      %v550 = vmul.f32 %v459, %v534
      %v551 = vmul.f32 %v462, %v534
      %v552 = vmul.f32 %v467, %v534
      %v553 = vmul.f32 %v470, %v534
      %v554 = vmul.f32 %v475, %v534
      %v555 = vmul.f32 %v478, %v534
      %v556 = vmul.f32 %v483, %v534
      %v557 = vmul.f32 %v486, %v534
      %v558 = vmul.f32 %v491, %v534
      %v559 = vmul.f32 %v494, %v534
      %v560 = vmul.f32 %v499, %v534
      %v561 = vmul.f32 %v502, %v534
      %v562 = vmul.f32 %v507, %v534
      %v563 = vmul.f32 %v510, %v534
      %v564 = vmul.f32 %v515, %v534
      %v565 = vmul.f32 %v518, %v534
      %v566 = vmul.f32 %v523, %v534
      %v567 = vmul.f32 %v526, %v534
      %v568 = vld [vmem:[%s3] sm:$0x1]
      %v570 = vlaneseq
      %v571 = vshrl.u32 %v570, 7
      %v572 = vsub.s32 0, %v571
      %v573 = vrot.slane %v568, %v572
      %v575 = vadd.f32 %v536, %v573
      %v576 = vadd.f32 %v537, %v573
      %v577 = vadd.f32 %v538, %v573
      %v578 = vadd.f32 %v539, %v573
      %v579 = vadd.f32 %v540, %v573
      %v580 = vadd.f32 %v541, %v573
      %v581 = vadd.f32 %v542, %v573
      %v582 = vadd.f32 %v543, %v573
      %v583 = vadd.f32 %v544, %v573
      %v584 = vadd.f32 %v545, %v573
      %v585 = vadd.f32 %v546, %v573
      %v586 = vadd.f32 %v547, %v573
      %v587 = vadd.f32 %v548, %v573
      %v588 = vadd.f32 %v549, %v573
      %v589 = vadd.f32 %v550, %v573
      %v590 = vadd.f32 %v551, %v573
      %v591 = vadd.f32 %v552, %v573
      %v592 = vadd.f32 %v553, %v573
      %v593 = vadd.f32 %v554, %v573
      %v594 = vadd.f32 %v555, %v573
      %v595 = vadd.f32 %v556, %v573
      %v596 = vadd.f32 %v557, %v573
      %v597 = vadd.f32 %v558, %v573
      %v598 = vadd.f32 %v559, %v573
      %v599 = vadd.f32 %v560, %v573
      %v600 = vadd.f32 %v561, %v573
      %v601 = vadd.f32 %v562, %v573
      %v602 = vadd.f32 %v563, %v573
      %v603 = vadd.f32 %v564, %v573
      %v604 = vadd.f32 %v565, %v573
      %v605 = vadd.f32 %v566, %v573
      %v606 = vadd.f32 %v567, %v573
      %v607 = vmin.f32 %v575, 20.0
      %v608 = vmin.f32 %v576, 20.0
      %v609 = vmin.f32 %v577, 20.0
      %v610 = vmin.f32 %v578, 20.0
      %v611 = vmin.f32 %v579, 20.0
      %v612 = vmin.f32 %v580, 20.0
      %v613 = vmin.f32 %v581, 20.0
      %v614 = vmin.f32 %v582, 20.0
      %v615 = vmin.f32 %v583, 20.0
      %v616 = vmin.f32 %v584, 20.0
      %v617 = vmin.f32 %v585, 20.0
      %v618 = vmin.f32 %v586, 20.0
      %v619 = vmin.f32 %v587, 20.0
      %v620 = vmin.f32 %v588, 20.0
      %v621 = vmin.f32 %v589, 20.0
      %v622 = vmin.f32 %v590, 20.0
      %v623 = vmin.f32 %v591, 20.0
      %v624 = vmin.f32 %v592, 20.0
      %v625 = vmin.f32 %v593, 20.0
      %v626 = vmin.f32 %v594, 20.0
      %v627 = vmin.f32 %v595, 20.0
      %v628 = vmin.f32 %v596, 20.0
      %v629 = vmin.f32 %v597, 20.0
      %v630 = vmin.f32 %v598, 20.0
      %v631 = vmin.f32 %v599, 20.0
      %v632 = vmin.f32 %v600, 20.0
      %v633 = vmin.f32 %v601, 20.0
      %v634 = vmin.f32 %v602, 20.0
      %v635 = vmin.f32 %v603, 20.0
      %v636 = vmin.f32 %v604, 20.0
      %v637 = vmin.f32 %v605, 20.0
      %v638 = vmin.f32 %v606, 20.0
      %v639 = vmul.f32 %v607, 1.442695
      %v640 = vpow.pop %v639
      %v641 = vmul.f32 %v608, 1.442695
      %v642 = vpow.pop %v641
      %v643 = vmul.f32 %v609, 1.442695
      %v644 = vpow.pop %v643
      %v645 = vmul.f32 %v610, 1.442695
      %v646 = vpow.pop %v645
      %v647 = vmul.f32 %v611, 1.442695
      %v648 = vpow.pop %v647
      %v649 = vmul.f32 %v612, 1.442695
      %v650 = vpow.pop %v649
      %v651 = vmul.f32 %v613, 1.442695
      %v652 = vpow.pop %v651
      %v653 = vmul.f32 %v614, 1.442695
      %v654 = vpow.pop %v653
      %v655 = vmul.f32 %v615, 1.442695
      %v656 = vpow.pop %v655
      %v657 = vmul.f32 %v616, 1.442695
      %v658 = vpow.pop %v657
      %v659 = vmul.f32 %v617, 1.442695
      %v660 = vpow.pop %v659
      %v661 = vmul.f32 %v618, 1.442695
      %v662 = vpow.pop %v661
      %v663 = vmul.f32 %v619, 1.442695
      %v664 = vpow.pop %v663
      %v665 = vmul.f32 %v620, 1.442695
      %v666 = vpow.pop %v665
      %v667 = vmul.f32 %v621, 1.442695
      %v668 = vpow.pop %v667
      %v669 = vmul.f32 %v622, 1.442695
      %v670 = vpow.pop %v669
      %v671 = vmul.f32 %v623, 1.442695
      %v672 = vpow.pop %v671
      %v673 = vmul.f32 %v624, 1.442695
      %v674 = vpow.pop %v673
      %v675 = vmul.f32 %v625, 1.442695
      %v676 = vpow.pop %v675
      %v677 = vmul.f32 %v626, 1.442695
      %v678 = vpow.pop %v677
      %v679 = vmul.f32 %v627, 1.442695
      %v680 = vpow.pop %v679
      %v681 = vmul.f32 %v628, 1.442695
      %v682 = vpow.pop %v681
      %v683 = vmul.f32 %v629, 1.442695
      %v684 = vpow.pop %v683
      %v685 = vmul.f32 %v630, 1.442695
      %v686 = vpow.pop %v685
      %v687 = vmul.f32 %v631, 1.442695
      %v688 = vpow.pop %v687
      %v689 = vmul.f32 %v632, 1.442695
      %v690 = vpow.pop %v689
      %v691 = vmul.f32 %v633, 1.442695
      %v692 = vpow.pop %v691
      %v693 = vmul.f32 %v634, 1.442695
      %v694 = vpow.pop %v693
      %v695 = vmul.f32 %v635, 1.442695
      %v696 = vpow.pop %v695
      %v697 = vmul.f32 %v636, 1.442695
      %v698 = vpow.pop %v697
      %v699 = vmul.f32 %v637, 1.442695
      %v700 = vpow.pop %v699
      %v701 = vmul.f32 %v638, 1.442695
      %v702 = vpow.pop %v701
      %v703 = vadd.f32 %v640, 2.0
      %v704 = vadd.f32 %v642, 2.0
      %v705 = vadd.f32 %v644, 2.0
      %v706 = vadd.f32 %v646, 2.0
      %v707 = vadd.f32 %v648, 2.0
      %v708 = vadd.f32 %v650, 2.0
      %v709 = vadd.f32 %v652, 2.0
      %v710 = vadd.f32 %v654, 2.0
      %v711 = vadd.f32 %v656, 2.0
      %v712 = vadd.f32 %v658, 2.0
      %v713 = vadd.f32 %v660, 2.0
      %v714 = vadd.f32 %v662, 2.0
      %v715 = vadd.f32 %v664, 2.0
      %v716 = vadd.f32 %v666, 2.0
      %v717 = vadd.f32 %v668, 2.0
      %v718 = vadd.f32 %v670, 2.0
      %v719 = vadd.f32 %v672, 2.0
      %v720 = vadd.f32 %v674, 2.0
      %v721 = vadd.f32 %v676, 2.0
      %v722 = vadd.f32 %v678, 2.0
      %v723 = vadd.f32 %v680, 2.0
      %v724 = vadd.f32 %v682, 2.0
      %v725 = vadd.f32 %v684, 2.0
      %v726 = vadd.f32 %v686, 2.0
      %v727 = vadd.f32 %v688, 2.0
      %v728 = vadd.f32 %v690, 2.0
      %v729 = vadd.f32 %v692, 2.0
      %v730 = vadd.f32 %v694, 2.0
      %v731 = vadd.f32 %v696, 2.0
      %v732 = vadd.f32 %v698, 2.0
      %v733 = vadd.f32 %v700, 2.0
      %v734 = vadd.f32 %v702, 2.0
      %v735 = vmul.f32 %v640, %v703
      %v736 = vmul.f32 %v642, %v704
      %v737 = vmul.f32 %v644, %v705
      %v738 = vmul.f32 %v646, %v706
      %v739 = vmul.f32 %v648, %v707
      %v740 = vmul.f32 %v650, %v708
      %v741 = vmul.f32 %v652, %v709
      %v742 = vmul.f32 %v654, %v710
      %v743 = vmul.f32 %v656, %v711
      %v744 = vmul.f32 %v658, %v712
      %v745 = vmul.f32 %v660, %v713
      %v746 = vmul.f32 %v662, %v714
      %v747 = vmul.f32 %v664, %v715
      %v748 = vmul.f32 %v666, %v716
      %v749 = vmul.f32 %v668, %v717
      %v750 = vmul.f32 %v670, %v718
      %v751 = vmul.f32 %v672, %v719
      %v752 = vmul.f32 %v674, %v720
      %v753 = vmul.f32 %v676, %v721
      %v754 = vmul.f32 %v678, %v722
      %v755 = vmul.f32 %v680, %v723
      %v756 = vmul.f32 %v682, %v724
      %v757 = vmul.f32 %v684, %v725
      %v758 = vmul.f32 %v686, %v726
      %v759 = vmul.f32 %v688, %v727
      %v760 = vmul.f32 %v690, %v728
      %v761 = vmul.f32 %v692, %v729
      %v762 = vmul.f32 %v694, %v730
      %v763 = vmul.f32 %v696, %v731
      %v764 = vmul.f32 %v698, %v732
      %v765 = vmul.f32 %v700, %v733
      %v766 = vmul.f32 %v702, %v734
      %v767 = vmul.f32 %v575, %v735
      %v768 = vmul.f32 %v576, %v736
      %v769 = vmul.f32 %v577, %v737
      %v770 = vmul.f32 %v578, %v738
      %v771 = vmul.f32 %v579, %v739
      %v772 = vmul.f32 %v580, %v740
      %v773 = vmul.f32 %v581, %v741
      %v774 = vmul.f32 %v582, %v742
      %v775 = vmul.f32 %v583, %v743
      %v776 = vmul.f32 %v584, %v744
      %v777 = vmul.f32 %v585, %v745
      %v778 = vmul.f32 %v586, %v746
      %v779 = vmul.f32 %v587, %v747
      %v780 = vmul.f32 %v588, %v748
      %v781 = vmul.f32 %v589, %v749
      %v782 = vmul.f32 %v590, %v750
      %v783 = vmul.f32 %v591, %v751
      %v784 = vmul.f32 %v592, %v752
      %v785 = vmul.f32 %v593, %v753
      %v786 = vmul.f32 %v594, %v754
      %v787 = vmul.f32 %v595, %v755
      %v788 = vmul.f32 %v596, %v756
      %v789 = vmul.f32 %v597, %v757
      %v790 = vmul.f32 %v598, %v758
      %v791 = vmul.f32 %v599, %v759
      %v792 = vmul.f32 %v600, %v760
      %v793 = vmul.f32 %v601, %v761
      %v794 = vmul.f32 %v602, %v762
      %v795 = vmul.f32 %v603, %v763
      %v796 = vmul.f32 %v604, %v764
      %v797 = vmul.f32 %v605, %v765
      %v798 = vmul.f32 %v606, %v766
      %v799 = vadd.f32 %v735, 2.0
      %v800 = vadd.f32 %v736, 2.0
      %v801 = vadd.f32 %v737, 2.0
      %v802 = vadd.f32 %v738, 2.0
      %v803 = vadd.f32 %v739, 2.0
      %v804 = vadd.f32 %v740, 2.0
      %v805 = vadd.f32 %v741, 2.0
      %v806 = vadd.f32 %v742, 2.0
      %v807 = vadd.f32 %v743, 2.0
      %v808 = vadd.f32 %v744, 2.0
      %v809 = vadd.f32 %v745, 2.0
      %v810 = vadd.f32 %v746, 2.0
      %v811 = vadd.f32 %v747, 2.0
      %v812 = vadd.f32 %v748, 2.0
      %v813 = vadd.f32 %v749, 2.0
      %v814 = vadd.f32 %v750, 2.0
      %v815 = vadd.f32 %v751, 2.0
      %v816 = vadd.f32 %v752, 2.0
      %v817 = vadd.f32 %v753, 2.0
      %v818 = vadd.f32 %v754, 2.0
      %v819 = vadd.f32 %v755, 2.0
      %v820 = vadd.f32 %v756, 2.0
      %v821 = vadd.f32 %v757, 2.0
      %v822 = vadd.f32 %v758, 2.0
      %v823 = vadd.f32 %v759, 2.0
      %v824 = vadd.f32 %v760, 2.0
      %v825 = vadd.f32 %v761, 2.0
      %v826 = vadd.f32 %v762, 2.0
      %v827 = vadd.f32 %v763, 2.0
      %v828 = vadd.f32 %v764, 2.0
      %v829 = vadd.f32 %v765, 2.0
      %v830 = vadd.f32 %v766, 2.0
      %v831 = vrcp.pop %v799
      %v832 = vrcp.pop %v800
      %v833 = vrcp.pop %v801
      %v834 = vrcp.pop %v802
      %v835 = vrcp.pop %v803
      %v836 = vrcp.pop %v804
      %v837 = vrcp.pop %v805
      %v838 = vrcp.pop %v806
      %v839 = vrcp.pop %v807
      %v840 = vrcp.pop %v808
      %v841 = vrcp.pop %v809
      %v842 = vrcp.pop %v810
      %v843 = vrcp.pop %v811
      %v844 = vrcp.pop %v812
      %v845 = vrcp.pop %v813
      %v846 = vrcp.pop %v814
      %v847 = vrcp.pop %v815
      %v848 = vrcp.pop %v816
      %v849 = vrcp.pop %v817
      %v850 = vrcp.pop %v818
      %v851 = vrcp.pop %v819
      %v852 = vrcp.pop %v820
      %v853 = vrcp.pop %v821
      %v854 = vrcp.pop %v822
      %v855 = vrcp.pop %v823
      %v856 = vrcp.pop %v824
      %v857 = vrcp.pop %v825
      %v858 = vrcp.pop %v826
      %v859 = vrcp.pop %v827
      %v860 = vrcp.pop %v828
      %v861 = vrcp.pop %v829
      %v862 = vrcp.pop %v830
      %v863 = vmul.f32 %v767, %v831
      %v864 = vmul.f32 %v768, %v832
      %v865 = vmul.f32 %v769, %v833
      %v866 = vmul.f32 %v770, %v834
      %v867 = vmul.f32 %v771, %v835
      %v868 = vmul.f32 %v772, %v836
      %v869 = vmul.f32 %v773, %v837
      %v870 = vmul.f32 %v774, %v838
      %v871 = vmul.f32 %v775, %v839
      %v872 = vmul.f32 %v776, %v840
      %v873 = vmul.f32 %v777, %v841
      %v874 = vmul.f32 %v778, %v842
      %v875 = vmul.f32 %v779, %v843
      %v876 = vmul.f32 %v780, %v844
      %v877 = vmul.f32 %v781, %v845
      %v878 = vmul.f32 %v782, %v846
      %v879 = vmul.f32 %v783, %v847
      %v880 = vmul.f32 %v784, %v848
      %v881 = vmul.f32 %v785, %v849
      %v882 = vmul.f32 %v786, %v850
      %v883 = vmul.f32 %v787, %v851
      %v884 = vmul.f32 %v788, %v852
      %v885 = vmul.f32 %v789, %v853
      %v886 = vmul.f32 %v790, %v854
      %v887 = vmul.f32 %v791, %v855
      %v888 = vmul.f32 %v792, %v856
      %v889 = vmul.f32 %v793, %v857
      %v890 = vmul.f32 %v794, %v858
      %v891 = vmul.f32 %v795, %v859
      %v892 = vmul.f32 %v796, %v860
      %v893 = vmul.f32 %v797, %v861
      %v894 = vmul.f32 %v798, %v862
      %v895 = vpack.c.bf16 %v864, %v863
      %v896 = vpack.c.bf16 %v866, %v865
      %v897 = vpack.c.bf16 %v868, %v867
      %v898 = vpack.c.bf16 %v870, %v869
      %v899 = vpack.c.bf16 %v872, %v871
      %v900 = vpack.c.bf16 %v874, %v873
      %v901 = vpack.c.bf16 %v876, %v875
      %v902 = vpack.c.bf16 %v878, %v877
      %v903 = vpack.c.bf16 %v880, %v879
      %v904 = vpack.c.bf16 %v882, %v881
      %v905 = vpack.c.bf16 %v884, %v883
      %v906 = vpack.c.bf16 %v886, %v885
      %v907 = vpack.c.bf16 %v888, %v887
      %v908 = vpack.c.bf16 %v890, %v889
      %v909 = vpack.c.bf16 %v892, %v891
      %v910 = vpack.c.bf16 %v894, %v893
      %v927 = vunpack.c.l.b16 %v895
      %v928 = vunpack.c.h.b16 %v895
      %v929 = vunpack.c.l.b16 %v896
      %v930 = vunpack.c.h.b16 %v896
      %v931 = vunpack.c.l.b16 %v897
      %v932 = vunpack.c.h.b16 %v897
      %v933 = vunpack.c.l.b16 %v898
      %v934 = vunpack.c.h.b16 %v898
      %v935 = vunpack.c.l.b16 %v899
      %v936 = vunpack.c.h.b16 %v899
      %v937 = vunpack.c.l.b16 %v900
      %v938 = vunpack.c.h.b16 %v900
      %v939 = vunpack.c.l.b16 %v901
      %v940 = vunpack.c.h.b16 %v901
      %v941 = vunpack.c.l.b16 %v902
      %v942 = vunpack.c.h.b16 %v902
      %v943 = vunpack.c.l.b16 %v903
      %v944 = vunpack.c.h.b16 %v903
      %v945 = vunpack.c.l.b16 %v904
      %v946 = vunpack.c.h.b16 %v904
      %v947 = vunpack.c.l.b16 %v905
      %v948 = vunpack.c.h.b16 %v905
      %v949 = vunpack.c.l.b16 %v906
      %v950 = vunpack.c.h.b16 %v906
      %v951 = vunpack.c.l.b16 %v907
      %v952 = vunpack.c.h.b16 %v907
      %v953 = vunpack.c.l.b16 %v908
      %v954 = vunpack.c.h.b16 %v908
      %v955 = vunpack.c.l.b16 %v909
      %v956 = vunpack.c.h.b16 %v909
      %v957 = vunpack.c.l.b16 %v910
      %v958 = vunpack.c.h.b16 %v910
      %v959 = vpack.c.b16 %v927, %v927
      %v960 = vpack.c.b16 %v928, %v928
      %v961 = vpack.c.b16 %v929, %v929
      %v962 = vpack.c.b16 %v930, %v930
      %v963 = vpack.c.b16 %v931, %v931
      %v964 = vpack.c.b16 %v932, %v932
      %v965 = vpack.c.b16 %v933, %v933
      %v966 = vpack.c.b16 %v934, %v934
      %v967 = vpack.c.b16 %v935, %v935
      %v968 = vpack.c.b16 %v936, %v936
      %v969 = vpack.c.b16 %v937, %v937
      %v970 = vpack.c.b16 %v938, %v938
      %v971 = vpack.c.b16 %v939, %v939
      %v972 = vpack.c.b16 %v940, %v940
      %v973 = vpack.c.b16 %v941, %v941
      %v974 = vpack.c.b16 %v942, %v942
      %v975 = vpack.c.b16 %v943, %v943
      %v976 = vpack.c.b16 %v944, %v944
      %v977 = vpack.c.b16 %v945, %v945
      %v978 = vpack.c.b16 %v946, %v946
      %v979 = vpack.c.b16 %v947, %v947
      %v980 = vpack.c.b16 %v948, %v948
      %v981 = vpack.c.b16 %v949, %v949
      %v982 = vpack.c.b16 %v950, %v950
      %v983 = vpack.c.b16 %v951, %v951
      %v984 = vpack.c.b16 %v952, %v952
      %v985 = vpack.c.b16 %v953, %v953
      %v986 = vpack.c.b16 %v954, %v954
      %v987 = vpack.c.b16 %v955, %v955
      %v988 = vpack.c.b16 %v956, %v956
      %v989 = vpack.c.b16 %v957, %v957
      %v990 = vpack.c.b16 %v958, %v958
      %vm1023 = vcmask 27648
      %1024 = vst.msk [vmem:[%s199] sm:$0xf] %vm1023, %v959
      %1025 = vst.msk [vmem:[%s199 + $0x4] sm:$0xf] %vm1023, %v960
      %1026 = vst.msk [vmem:[%s199 + $0x8] sm:$0xf] %vm1023, %v961
      %1027 = vst.msk [vmem:[%s199 + $0xc] sm:$0xf] %vm1023, %v962
      %1028 = vst.msk [vmem:[%s199 + $0x10] sm:$0xf] %vm1023, %v963
      %1029 = vst.msk [vmem:[%s199 + $0x14] sm:$0xf] %vm1023, %v964
      %1030 = vst.msk [vmem:[%s199 + $0x18] sm:$0xf] %vm1023, %v965
      %1031 = vst.msk [vmem:[%s199 + $0x1c] sm:$0xf] %vm1023, %v966
      %1032 = vst.msk [vmem:[%s199 + $0x20] sm:$0xf] %vm1023, %v967
      %1033 = vst.msk [vmem:[%s199 + $0x24] sm:$0xf] %vm1023, %v968
      %1034 = vst.msk [vmem:[%s199 + $0x28] sm:$0xf] %vm1023, %v969
      %1035 = vst.msk [vmem:[%s199 + $0x2c] sm:$0xf] %vm1023, %v970
      %1036 = vst.msk [vmem:[%s199 + $0x30] sm:$0xf] %vm1023, %v971
      %1037 = vst.msk [vmem:[%s199 + $0x34] sm:$0xf] %vm1023, %v972
      %1038 = vst.msk [vmem:[%s199 + $0x38] sm:$0xf] %vm1023, %v973
      %1039 = vst.msk [vmem:[%s199 + $0x3c] sm:$0xf] %vm1023, %v974
      %1040 = vst.msk [vmem:[%s199 + $0x40] sm:$0xf] %vm1023, %v975
      %1041 = vst.msk [vmem:[%s199 + $0x44] sm:$0xf] %vm1023, %v976
      %1042 = vst.msk [vmem:[%s199 + $0x48] sm:$0xf] %vm1023, %v977
      %1043 = vst.msk [vmem:[%s199 + $0x4c] sm:$0xf] %vm1023, %v978
      %1044 = vst.msk [vmem:[%s199 + $0x50] sm:$0xf] %vm1023, %v979
      %1045 = vst.msk [vmem:[%s199 + $0x54] sm:$0xf] %vm1023, %v980
      %1046 = vst.msk [vmem:[%s199 + $0x58] sm:$0xf] %vm1023, %v981
      %1047 = vst.msk [vmem:[%s199 + $0x5c] sm:$0xf] %vm1023, %v982
      %1048 = vst.msk [vmem:[%s199 + $0x60] sm:$0xf] %vm1023, %v983
      %1049 = vst.msk [vmem:[%s199 + $0x64] sm:$0xf] %vm1023, %v984
      %1050 = vst.msk [vmem:[%s199 + $0x68] sm:$0xf] %vm1023, %v985
      %1051 = vst.msk [vmem:[%s199 + $0x6c] sm:$0xf] %vm1023, %v986
      %1052 = vst.msk [vmem:[%s199 + $0x70] sm:$0xf] %vm1023, %v987
      %1053 = vst.msk [vmem:[%s199 + $0x74] sm:$0xf] %vm1023, %v988
      %1054 = vst.msk [vmem:[%s199 + $0x78] sm:$0xf] %vm1023, %v989
      %1055 = vst.msk [vmem:[%s199 + $0x7c] sm:$0xf] %vm1023, %v990
      %s1056 = smul.u32 32, %s15
      %p1057 = scmp.lt.s32.totalorder %s1056, 63
      %s1058 = scalar_select %p1057, %s1056, 63
      %s1059 = smul.addr %s1058, 4
      %s1060 = scalar_lea.vmem %s4, %s1059
      // Predicated region
      $region37: #{tpu_custom_call.1} parent=35 // pred_check
        %p1061 = pneg %p122
      $region38: #{tpu_custom_call.1} parent=35 // pred_check_branch
        %1063 = sbr.rel (%p1061) target = $region40
      $region39: #{tpu_custom_call.1} parent=35 // pred_region
        %s1064 = smul.u32 32, %s15
      $region40: #{tpu_custom_call.1} parent=35 // pred_fallthru
        _
    $region36: #{tpu_custom_call.1} parent=5 // pred_fallthru
      _
    %p1065 = scmp.le.s32.totalorder 2, %s10
    // Predicated region
    $region41: #{tpu_custom_call.1} parent=5 // pred_check
      %p1066 = pneg %p1065
    $region42: #{tpu_custom_call.1} parent=5 // pred_check_branch
      %1068 = sbr.rel (%p1066) target = $region44
    $region43: #{tpu_custom_call.1} parent=5 // pred_region
      %s1069 = ssub.s32 %s10, 2
      // Predicated region
      $region45: #{tpu_custom_call.1} parent=43 // pred_check
        %p1070 = pneg %p128
      $region46: #{tpu_custom_call.1} parent=43 // pred_check_branch
        %1072 = sbr.rel (%p1070) target = $region48
      $region47: #{tpu_custom_call.1} parent=43 // pred_region
        %s1073 = smul.u32 32, %s16
        %p1074 = scmp.lt.s32.totalorder %s1073, 63
        %s1075 = scalar_select %p1074, %s1073, 63
        %s1076 = smul.addr %s1075, 4
        %s1077 = scalar_lea.vmem %s4, %s1076
      $region48: #{tpu_custom_call.1} parent=43 // pred_fallthru
        _
    $region44: #{tpu_custom_call.1} parent=5 // pred_fallthru
      _
  $region6: #{tpu_custom_call.1} parent=0 // loop_footer
    %s14 = sadd.s32 1, %s10
  $region7: #{tpu_custom_call.1} parent=0 // loop_footer_branch
    %9 = sbr.rel target = $region3
  $region8: #{tpu_custom_call.1} parent=0 // loop_exit
    _

</llo_original>
